<compile_context>
chip_gen: v6e
topology: v6e:2x2x1
jax: 0.10.0
libtpu: 0.0.40
codegen_flags: <defaults>
</compile_context>

<pallas_src>
import math
import functools

import jax
import jax.numpy as jnp
from jax import lax
from jax.experimental import pallas as pl
from jax.experimental.pallas import tpu as pltpu


def _round_up(x, m):
    return ((x + m - 1) // m) * m


def _random_layer_kernel(*refs, num_inputs, scale):
    """Fused kernel: num_inputs matmuls + scaled elementwise product.

    refs = (x_0, ..., x_{n-1}, R_0, ..., R_{n-1}, out)
    Each x_i tile is (tm, d_i), each R_i tile is (d_i, output_dim) and is
    VMEM-resident across the whole grid, out tile is (tm, output_dim).
    """
    x_refs = refs[:num_inputs]
    r_refs = refs[num_inputs:2 * num_inputs]
    o_ref = refs[2 * num_inputs]

    # First term carries the 1/output_dim**(1/num) division (as in PyTorch).
    acc = jnp.dot(x_refs[0][...], r_refs[0][...],
                  preferred_element_type=jnp.float32,
                  precision=lax.Precision.HIGHEST) * scale
    # Remaining terms multiply in elementwise.
    for x_ref, r_ref in zip(x_refs[1:], r_refs[1:]):
        acc = acc * jnp.dot(x_ref[...], r_ref[...],
                            preferred_element_type=jnp.float32,
                            precision=lax.Precision.HIGHEST)

    o_ref[...] = acc.astype(o_ref.dtype)


def _vmem_bytes(tm, dims, output_dim, itemsize=4):
    """Conservative VMEM estimate: double-buffered x/out tiles + resident R,
    with lane (128) / sublane (8) padding."""
    lane = lambda d: _round_up(d, 128)
    sub = lambda d: _round_up(d, 8)
    x_bytes = sum(2 * sub(tm) * lane(d) * itemsize for d in dims)
    r_bytes = sum(2 * sub(d) * lane(output_dim) * itemsize for d in dims)
    o_bytes = 2 * sub(tm) * lane(output_dim) * itemsize
    return x_bytes + r_bytes + o_bytes


def _choose_tm(n, dims, output_dim, *, tm_max=512, tm_min=128, target_steps=8,
               vmem_budget=24 * 1024 * 1024):
    """Pick a batch tile that (a) gives several grid steps per TensorCore for
    larger batches, (b) is a multiple of 8 (sublane), (c) fits VMEM budget."""
    if n <= tm_min:
        tm = max(8, _round_up(n, 8))          # single full-block grid step
    else:
        tm = _round_up(pl.cdiv(n, target_steps), 8)
        tm = max(tm_min, min(tm_max, tm))
    # VMEM guard (matters when output_dim is scaled up; v7x has 64 MiB VMEM).
    while tm > 8 and _vmem_bytes(tm, dims, output_dim) > vmem_budget:
        tm = max(8, (tm // 2 // 8) * 8)
    return tm


def random_layer_pallas(input_list, random_matrices, *, tm_max=512):
    """Pallas implementation of RandomLayer.forward.

    input_list[i]       : [N, d_i]  float32
    random_matrices[i]  : [d_i, output_dim] float32
    returns             : [N, output_dim] float32
    """
    num_inputs = len(input_list)
    assert num_inputs == len(random_matrices) and num_inputs >= 1
    n = input_list[0].shape[0]
    dims = [x.shape[1] for x in input_list]
    for x, r, d in zip(input_list, random_matrices, dims):
        assert x.shape[0] == n and r.shape[0] == d
    output_dim = random_matrices[0].shape[1]
    assert all(r.shape[1] == output_dim for r in random_matrices)
    scale = 1.0 / math.pow(float(output_dim), 1.0 / num_inputs)

    # --- Tile selection -----------------------------------------------------
    tm = _choose_tm(n, dims, output_dim, tm_max=tm_max)
    grid = (pl.cdiv(n, tm),)   # ragged last block handled by Pallas (no pad)

    # --- BlockSpecs -----------------------------------------------------------
    in_specs = []
    # x_i: tile the batch dim, keep full contraction dim d_i in VMEM.
    for d in dims:
        in_specs.append(pl.BlockSpec((tm, d), lambda i: (i, 0)))
    # R_i: full-extent block with a constant index_map -> DMA'd once,
    # VMEM-resident across all grid steps.
    for d in dims:
        in_specs.append(pl.BlockSpec((d, output_dim), lambda i: (0, 0)))

    # Lane-dense output tile: full output_dim on lanes -> unmasked vst.
    out_spec = pl.BlockSpec((tm, output_dim), lambda i: (i, 0))

    kernel = functools.partial(_random_layer_kernel,
                               num_inputs=num_inputs, scale=scale)

    sum_d = sum(dims)
    flops = 2 * n * sum_d * output_dim + num_inputs * n * output_dim
    bytes_accessed = 4 * (n * sum_d          # all x_i
                          + sum_d * output_dim   # all R_i
                          + n * output_dim)      # out
    cost = pl.CostEstimate(flops=flops, transcendentals=0,
                           bytes_accessed=bytes_accessed)

    out = pl.pallas_call(
        kernel,
        out_shape=jax.ShapeDtypeStruct((n, output_dim), jnp.float32),
        grid_spec=pltpu.PrefetchScalarGridSpec(
            num_scalar_prefetch=0,
            grid=grid,
            in_specs=in_specs,
            out_specs=out_spec,
        ),
        compiler_params=pltpu.CompilerParams(
            dimension_semantics=("parallel",)),
        cost_estimate=cost,
    )(*input_list, *random_matrices)

    return out


def random_layer_reference(input_list, random_matrices):
    num = len(input_list)
    output_dim = random_matrices[0].shape[1]
    mats = [jnp.dot(x, r, precision=lax.Precision.HIGHEST)
            for x, r in zip(input_list, random_matrices)]
    out = mats[0] / math.pow(float(output_dim), 1.0 / num)
    for m in mats[1:]:
        out = out * m
    return out


if __name__ == "__main__":
    key = jax.random.PRNGKey(0)

    # Case 1: tiny batch (single full-block grid step).
    k_x0, k_x1, k_r0, k_r1, key = jax.random.split(key, 5)
    batch = 8
    input_dim_list = [32, 16]   # two feature streams (e.g. features + logits)
    output_dim = 128            # small stand-in for default 512

    x0 = jax.random.normal(k_x0, (batch, input_dim_list[0]), dtype=jnp.float32)
    x1 = jax.random.normal(k_x1, (batch, input_dim_list[1]), dtype=jnp.float32)
    R0 = jax.random.normal(k_r0, (input_dim_list[0], output_dim), dtype=jnp.float32)
    R1 = jax.random.normal(k_r1, (input_dim_list[1], output_dim), dtype=jnp.float32)

    out = jax.block_until_ready(random_layer_pallas([x0, x1], [R0, R1]))
    ref = random_layer_reference([x0, x1], [R0, R1])
    assert out.shape == (batch, output_dim)
    assert jnp.allclose(out, ref, rtol=1e-4, atol=1e-4), "mismatch vs reference (small)"

    # Case 2: larger, non-multiple-of-tile batch (exercises ragged-last-block
    # path with ~8 grid steps, no padding / slicing in the wrapper).
    k_x0, k_x1, k_r0, k_r1, key = jax.random.split(key, 5)
    batch2 = 1000
    output_dim2 = 512           # module default
    x0b = jax.random.normal(k_x0, (batch2, input_dim_list[0]), dtype=jnp.float32)
    x1b = jax.random.normal(k_x1, (batch2, input_dim_list[1]), dtype=jnp.float32)
    R0b = jax.random.normal(k_r0, (input_dim_list[0], output_dim2), dtype=jnp.float32)
    R1b = jax.random.normal(k_r1, (input_dim_list[1], output_dim2), dtype=jnp.float32)

    out2 = jax.block_until_ready(random_layer_pallas([x0b, x1b], [R0b, R1b]))
    ref2 = random_layer_reference([x0b, x1b], [R0b, R1b])
    assert out2.shape == (batch2, output_dim2)
    assert jnp.allclose(out2, ref2, rtol=1e-4, atol=1e-4), "mismatch vs reference (large)"

    print("KERNEL_OK")
</pallas_src>

<mosaic_0001>
module attributes {stable_mosaic.version = 11 : i64} {
  func.func @_random_layer_kernel(%arg0: i32, %arg1: memref<8x32xf32, #tpu.memory_space<vmem>>, %arg2: memref<8x16xf32, #tpu.memory_space<vmem>>, %arg3: memref<32x128xf32, #tpu.memory_space<vmem>>, %arg4: memref<16x128xf32, #tpu.memory_space<vmem>>, %arg5: memref<8x128xf32, #tpu.memory_space<vmem>>) attributes {dimension_semantics = [#tpu.dimension_semantics<parallel>], iteration_bounds = array<i64: 1>, scalar_prefetch = 0 : i64, scratch_operands = 0 : i64, tpu.core_type = #tpu.core_type<tc>, window_params = [{transform_indices = @transform_0, window_bounds = array<i64: 8, 32>}, {transform_indices = @transform_1, window_bounds = array<i64: 8, 16>}, {pipeline_mode = #tpu.pipeline_mode<synchronous>, transform_indices = @transform_2, window_bounds = array<i64: 32, 128>}, {pipeline_mode = #tpu.pipeline_mode<synchronous>, transform_indices = @transform_3, window_bounds = array<i64: 16, 128>}, {transform_indices = @transform_4, window_bounds = array<i64: 8, 128>}]} {
    %c0 = arith.constant 0 : index
    %c0_0 = arith.constant 0 : index
    %0 = vector.load %arg1[%c0, %c0_0] : memref<8x32xf32, #tpu.memory_space<vmem>>, vector<8x32xf32>
    %c0_1 = arith.constant 0 : index
    %c0_2 = arith.constant 0 : index
    %1 = vector.load %arg3[%c0_1, %c0_2] : memref<32x128xf32, #tpu.memory_space<vmem>>, vector<32x128xf32>
    %cst = arith.constant dense<0.000000e+00> : vector<8x128xf32>
    %2 = tpu.matmul %0, %1, %cst {dimension_numbers = #tpu.dot_dimension_numbers<[1], [0], [0], [1], [0, 0, 1, 1], [], []>, precision = #tpu.contract_precision<fp32>} : vector<8x32xf32>, vector<32x128xf32>, vector<8x128xf32> -> vector<8x128xf32>
    %cst_3 = arith.constant 0.0883883461 : f32
    %3 = vector.broadcast %cst_3 : f32 to vector<8x128xf32>
    %4 = arith.mulf %2, %3 : vector<8x128xf32>
    %c0_4 = arith.constant 0 : index
    %c0_5 = arith.constant 0 : index
    %5 = vector.load %arg2[%c0_4, %c0_5] : memref<8x16xf32, #tpu.memory_space<vmem>>, vector<8x16xf32>
    %c0_6 = arith.constant 0 : index
    %c0_7 = arith.constant 0 : index
    %6 = vector.load %arg4[%c0_6, %c0_7] : memref<16x128xf32, #tpu.memory_space<vmem>>, vector<16x128xf32>
    %cst_8 = arith.constant dense<0.000000e+00> : vector<8x128xf32>
    %7 = tpu.matmul %5, %6, %cst_8 {dimension_numbers = #tpu.dot_dimension_numbers<[1], [0], [0], [1], [0, 0, 1, 1], [], []>, precision = #tpu.contract_precision<fp32>} : vector<8x16xf32>, vector<16x128xf32>, vector<8x128xf32> -> vector<8x128xf32>
    %8 = arith.mulf %4, %7 : vector<8x128xf32>
    %c0_9 = arith.constant 0 : index
    %c0_10 = arith.constant 0 : index
    %9 = vector.load %arg5[%c0_9, %c0_10] : memref<8x128xf32, #tpu.memory_space<vmem>>, vector<8x128xf32>
    tpu.vector_store %arg5[%c0_9, %c0_10], %8 {strides = array<i32>} : memref<8x128xf32, #tpu.memory_space<vmem>>, vector<8x128xf32>,
    return
  }
  func.func @transform_0(%arg0: i32) -> (i32, i32) {
    %c0_i32 = arith.constant 0 : i32
    %c0_i32_0 = arith.constant 0 : i32
    return %arg0, %c0_i32 : i32, i32
  }
  func.func @transform_1(%arg0: i32) -> (i32, i32) {
    %c0_i32 = arith.constant 0 : i32
    %c0_i32_0 = arith.constant 0 : i32
    return %arg0, %c0_i32 : i32, i32
  }
  func.func @transform_2(%arg0: i32) -> (i32, i32) {
    %c0_i32 = arith.constant 0 : i32
    %c0_i32_0 = arith.constant 0 : i32
    %c0_i32_1 = arith.constant 0 : i32
    return %c0_i32, %c0_i32_0 : i32, i32
  }
  func.func @transform_3(%arg0: i32) -> (i32, i32) {
    %c0_i32 = arith.constant 0 : i32
    %c0_i32_0 = arith.constant 0 : i32
    %c0_i32_1 = arith.constant 0 : i32
    return %c0_i32, %c0_i32_0 : i32, i32
  }
  func.func @transform_4(%arg0: i32) -> (i32, i32) {
    %c0_i32 = arith.constant 0 : i32
    %c0_i32_0 = arith.constant 0 : i32
    return %arg0, %c0_i32 : i32, i32
  }
}

</mosaic_0001>

<llo_original>
// kernel: tpu_custom_call.1
$region0: #{tpu_custom_call.1}
  #allocation0 [shape = 'u32[]', space=smem, size = 0x4, offset = 0x4, fixed_abs, tag = 'smem constant byte address 0x4 - core index']
  #allocation1 [shape = 'u32[144,128]{1,0:T(1,128)}', space=vmem, size = 0x12000, scoped, tag = 'internal scratch']
  %s0 = inlined_call_operand.hbm [shape: f32[8,32], index: 0, kind: input, shape index: {}]
  %s1 = inlined_call_operand.hbm [shape: f32[8,16], index: 1, kind: input, shape index: {}]
  %s2 = inlined_call_operand.hbm [shape: f32[32,128], index: 2, kind: input, shape index: {}]
  %s3 = inlined_call_operand.hbm [shape: f32[16,128], index: 3, kind: input, shape index: {}]
  %s4 = inlined_call_operand.hbm [shape: f32[8,128], index: 4, kind: output, shape index: {}]
  %s5 = sld [smem:[#allocation0]]
  $region42: #{tpu_custom_call.1} parent=0
    _
  %s7 = ssub.s32 1, %s5
  %s8 = scalar_select 0, %s7, %s5
  $region1: #{tpu_custom_call.1} parent=0
    #allocation2 [shape = 'u8[4096]{0}', space=vmem, size = 0x1000, scoped, tag = 'input window, operand 0, single buffered']
    #allocation3 [shape = 's32[1]{0}', space=sflag, size = 0x4, scoped, tag = 'scoped memory for tpu_custom_call.1']
    #allocation4 [shape = 's32[1]{0}', space=sflag, size = 0x4, scoped, tag = 'scoped memory for tpu_custom_call.1']
    #allocation5 [shape = 'u8[4096]{0}', space=vmem, size = 0x1000, scoped, tag = 'input window, operand 1, single buffered']
    #allocation6 [shape = 's32[1]{0}', space=sflag, size = 0x4, scoped, tag = 'scoped memory for tpu_custom_call.1']
    #allocation7 [shape = 'u8[16384]{0}', space=vmem, size = 0x4000, scoped, tag = 'input window, operand 2, single buffered']
    #allocation8 [shape = 'u8[8192]{0}', space=vmem, size = 0x2000, scoped, tag = 'input window, operand 3, single buffered']
    #allocation9 [shape = 's32[1]{0}', space=sflag, size = 0x4, scoped, tag = 'scoped memory for tpu_custom_call.1']
    #allocation10 [shape = 'u8[4096]{0}', space=vmem, size = 0x1000, scoped, tag = 'output window, operand 0, single buffered']
    %9 = vsyncpa [#allocation3], 0
    %10 = vsyncpa [#allocation6], 0
    %11 = vsyncpa [#allocation9], 0
    %12 = vsyncpa [#allocation4], 0
    // Predicated region
    $region2: #{tpu_custom_call.1} parent=1 // pred_check
      _
    $region3: #{tpu_custom_call.1} parent=1 // pred_check_branch
      %14 = sbr.rel (0) target = $region5
    $region4: #{tpu_custom_call.1} parent=1 // pred_region
      %s16 = ssub.s32 128, 128
      %17 = vsyncadd [#allocation3], %s16
      %s19 = sshll.u32 [#allocation2], 4
      %s20 = int_to_ptr.vmem [resolvable:$true] %s19
      %22 = dma.hbm_to_vmem [thread:$0]  %s0, 128, %s20, [#allocation3]
    $region5: #{tpu_custom_call.1} parent=1 // pred_fallthru
      _
    // Predicated region
    $region6: #{tpu_custom_call.1} parent=1 // pred_check
      _
    $region7: #{tpu_custom_call.1} parent=1 // pred_check_branch
      %24 = sbr.rel (0) target = $region9
    $region8: #{tpu_custom_call.1} parent=1 // pred_region
      %s26 = ssub.s32 128, 128
      %27 = vsyncadd [#allocation6], %s26
      %s29 = sshll.u32 [#allocation5], 4
      %s30 = int_to_ptr.vmem [resolvable:$true] %s29
      %32 = dma.hbm_to_vmem [thread:$0]  %s1, 128, %s30, [#allocation6]
    $region9: #{tpu_custom_call.1} parent=1 // pred_fallthru
      _
    // Predicated region
    $region10: #{tpu_custom_call.1} parent=1 // pred_check
      _
    $region11: #{tpu_custom_call.1} parent=1 // pred_check_branch
      %34 = sbr.rel (0) target = $region13
    $region12: #{tpu_custom_call.1} parent=1 // pred_region
      %s36 = ssub.s32 512, 512
      %37 = vsyncadd [#allocation6], %s36
      %s38 = sshll.u32 [#allocation7], 4
      %s39 = int_to_ptr.vmem [resolvable:$true] %s38
      %44 = dma.hbm_to_vmem [thread:$0]  %s2, 512, %s39, [#allocation6], 128, 128, 8
    $region13: #{tpu_custom_call.1} parent=1 // pred_fallthru
      _
    // Predicated region
    $region14: #{tpu_custom_call.1} parent=1 // pred_check
      _
    $region15: #{tpu_custom_call.1} parent=1 // pred_check_branch
      %46 = sbr.rel (0) target = $region17
    $region16: #{tpu_custom_call.1} parent=1 // pred_region
      %s48 = ssub.s32 256, 256
      %49 = vsyncadd [#allocation9], %s48
      %s50 = sshll.u32 [#allocation8], 4
      %s51 = int_to_ptr.vmem [resolvable:$true] %s50
      %56 = dma.hbm_to_vmem [thread:$0]  %s3, 256, %s51, [#allocation9], 128, 128, 8
    $region17: #{tpu_custom_call.1} parent=1 // pred_fallthru
      _
    // Predicated region
    $region18: #{tpu_custom_call.1} parent=1 // pred_check
      _
    $region19: #{tpu_custom_call.1} parent=1 // pred_check_branch
      %58 = sbr.rel (0) target = $region21
    $region20: #{tpu_custom_call.1} parent=1 // pred_region
      %59 = dma.done [#allocation3], 128
    $region21: #{tpu_custom_call.1} parent=1 // pred_fallthru
      _
    // Predicated region
    $region22: #{tpu_custom_call.1} parent=1 // pred_check
      _
    $region23: #{tpu_custom_call.1} parent=1 // pred_check_branch
      %61 = sbr.rel (0) target = $region25
    $region24: #{tpu_custom_call.1} parent=1 // pred_region
      %62 = dma.done [#allocation6], 128
    $region25: #{tpu_custom_call.1} parent=1 // pred_fallthru
      _
    // Predicated region
    $region26: #{tpu_custom_call.1} parent=1 // pred_check
      _
    $region27: #{tpu_custom_call.1} parent=1 // pred_check_branch
      %64 = sbr.rel (0) target = $region29
    $region28: #{tpu_custom_call.1} parent=1 // pred_region
      %65 = dma.done [#allocation6], 512
    $region29: #{tpu_custom_call.1} parent=1 // pred_fallthru
      _
    // Predicated region
    $region30: #{tpu_custom_call.1} parent=1 // pred_check
      _
    $region31: #{tpu_custom_call.1} parent=1 // pred_check_branch
      %67 = sbr.rel (0) target = $region33
    $region32: #{tpu_custom_call.1} parent=1 // pred_region
      %68 = dma.done [#allocation9], 256
    $region33: #{tpu_custom_call.1} parent=1 // pred_fallthru
      _
    %v69 = vld [vmem:[#allocation2] sm:$0xff]
    %v70 = vld [vmem:[#allocation7] sm:$0xff]
    %v71 = vld [vmem:[#allocation7 + $0x8] sm:$0xff]
    %v72 = vld [vmem:[#allocation7 + $0x10] sm:$0xff]
    %v73 = vld [vmem:[#allocation7 + $0x18] sm:$0xff]
    %vm74 = vcmask 261120
    %v76 = vsel %vm74, %v69, 0
    %78 = vmatprep.subr.mxu0 0.0
    %79 = vmatpush1.msra.mxu0 0.0
    %80 = vmatprep.subr.mxu0 0.0
    %81 = vmatpush1.msra.mxu0 0.0
    %82 = vmatprep.subr.mxu0 0.0
    %83 = vmatpush1.msra.mxu0 0.0
    %84 = vmatprep.subr.mxu0 0.0
    %85 = vmatpush1.msra.mxu0 0.0
    %86 = vmatprep.subr.mxu0 0.0
    %87 = vmatpush1.msra.mxu0 0.0
    %88 = vmatprep.subr.mxu0 0.0
    %89 = vmatpush1.msra.mxu0 0.0
    %90 = vmatprep.subr.mxu0 0.0
    %91 = vmatpush1.msra.mxu0 0.0
    %92 = vmatprep.subr.mxu0 0.0
    %93 = vmatpush1.msra.mxu0 0.0
    %94 = vmatprep.subr.mxu0 0.0
    %95 = vmatpush1.msra.mxu0 0.0
    %96 = vmatprep.subr.mxu0 0.0
    %97 = vmatpush1.msra.mxu0 0.0
    %98 = vmatprep.subr.mxu0 0.0
    %99 = vmatpush1.msra.mxu0 0.0
    %100 = vmatprep.subr.mxu0 0.0
    %101 = vmatpush1.msra.mxu0 0.0
    %102 = vmatprep.subr.mxu0 0.0
    %v103 = vand.u32 %v73, 4294901760
    %104 = vmatpush1.msra.mxu0 %v103
    %105 = vmatprep.subr.mxu0 0.0
    %v106 = vand.u32 %v72, 4294901760
    %107 = vmatpush1.msra.mxu0 %v106
    %108 = vmatprep.subr.mxu0 0.0
    %v109 = vand.u32 %v71, 4294901760
    %110 = vmatpush1.msra.mxu0 %v109
    %111 = vmatprep.subr.mxu0 0.0
    %v112 = vand.u32 %v70, 4294901760
    %113 = vmatpush1.msra.mxu0 %v112
    %114 = vmatprep.subr.mxu0 0.0
    %115 = vmatpush2.msra.mxu0 0.0
    %116 = vmatprep.subr.mxu0 0.0
    %117 = vmatpush2.msra.mxu0 0.0
    %118 = vmatprep.subr.mxu0 0.0
    %119 = vmatpush2.msra.mxu0 0.0
    %120 = vmatprep.subr.mxu0 0.0
    %121 = vmatpush2.msra.mxu0 0.0
    %122 = vmatprep.subr.mxu0 0.0
    %123 = vmatpush2.msra.mxu0 0.0
    %124 = vmatprep.subr.mxu0 0.0
    %125 = vmatpush2.msra.mxu0 0.0
    %126 = vmatprep.subr.mxu0 0.0
    %127 = vmatpush2.msra.mxu0 0.0
    %128 = vmatprep.subr.mxu0 0.0
    %129 = vmatpush2.msra.mxu0 0.0
    %130 = vmatprep.subr.mxu0 0.0
    %131 = vmatpush2.msra.mxu0 0.0
    %132 = vmatprep.subr.mxu0 0.0
    %133 = vmatpush2.msra.mxu0 0.0
    %134 = vmatprep.subr.mxu0 0.0
    %135 = vmatpush2.msra.mxu0 0.0
    %136 = vmatprep.subr.mxu0 0.0
    %137 = vmatpush2.msra.mxu0 0.0
    %138 = vmatprep.subr.mxu0 0.0
    %139 = vmatpush2.msra.mxu0 0.0
    %140 = vmatprep.subr.mxu0 0.0
    %141 = vmatpush2.msra.mxu0 0.0
    %142 = vmatprep.subr.mxu0 0.0
    %143 = vmatpush2.msra.mxu0 0.0
    %144 = vmatprep.subr.mxu0 0.0
    %145 = vmatpush2.msra.mxu0 0.0
    %146 = vmatprep.mubr.f32.mxu0 0.0
    %v147 = vand.u32 %v76, 4294901760
    %v148 = vsub.f32 %v76, %v147
    %v149 = vand.u32 %v148, 4294901760
    %v150 = vsub.f32 %v148, %v149
    %v151 = vand.u32 %v150, 4294901760
    %152 = vmatmul.mubr.f32.gmra.mxu0 %v151
    %v153 = vpop.f32.mrf.mxu0
    %v154 = vadd.f32 0.0, %v153
    %v155 = vpop.f32.mrf.mxu0
    %156 = vdwg.mxu0
    %157 = vmatprep.subr.mxu0 0.0
    %158 = vmatpush1.msra.mxu0 0.0
    %159 = vmatprep.subr.mxu0 0.0
    %160 = vmatpush1.msra.mxu0 0.0
    %161 = vmatprep.subr.mxu0 0.0
    %162 = vmatpush1.msra.mxu0 0.0
    %163 = vmatprep.subr.mxu0 0.0
    %164 = vmatpush1.msra.mxu0 0.0
    %165 = vmatprep.subr.mxu0 0.0
    %166 = vmatpush1.msra.mxu0 0.0
    %167 = vmatprep.subr.mxu0 0.0
    %168 = vmatpush1.msra.mxu0 0.0
    %169 = vmatprep.subr.mxu0 0.0
    %170 = vmatpush1.msra.mxu0 0.0
    %171 = vmatprep.subr.mxu0 0.0
    %172 = vmatpush1.msra.mxu0 0.0
    %173 = vmatprep.subr.mxu0 0.0
    %174 = vmatpush1.msra.mxu0 0.0
    %175 = vmatprep.subr.mxu0 0.0
    %176 = vmatpush1.msra.mxu0 0.0
    %177 = vmatprep.subr.mxu0 0.0
    %178 = vmatpush1.msra.mxu0 0.0
    %179 = vmatprep.subr.mxu0 0.0
    %180 = vmatpush1.msra.mxu0 0.0
    %181 = vmatprep.subr.mxu0 0.0
    %v182 = vand.u32 %v73, 4294901760
    %v183 = vsub.f32 %v73, %v182
    %v184 = vand.u32 %v183, 4294901760
    %v185 = vsub.f32 %v183, %v184
    %v186 = vand.u32 %v185, 4294901760
    %187 = vmatpush1.msra.mxu0 %v186
    %188 = vmatprep.subr.mxu0 0.0
    %v189 = vand.u32 %v72, 4294901760
    %v190 = vsub.f32 %v72, %v189
    %v191 = vand.u32 %v190, 4294901760
    %v192 = vsub.f32 %v190, %v191
    %v193 = vand.u32 %v192, 4294901760
    %194 = vmatpush1.msra.mxu0 %v193
    %195 = vmatprep.subr.mxu0 0.0
    %v196 = vand.u32 %v71, 4294901760
    %v197 = vsub.f32 %v71, %v196
    %v198 = vand.u32 %v197, 4294901760
    %v199 = vsub.f32 %v197, %v198
    %v200 = vand.u32 %v199, 4294901760
    %201 = vmatpush1.msra.mxu0 %v200
    %202 = vmatprep.subr.mxu0 0.0
    %v203 = vand.u32 %v70, 4294901760
    %v204 = vsub.f32 %v70, %v203
    %v205 = vand.u32 %v204, 4294901760
    %v206 = vsub.f32 %v204, %v205
    %v207 = vand.u32 %v206, 4294901760
    %208 = vmatpush1.msra.mxu0 %v207
    %209 = vmatprep.subr.mxu0 0.0
    %210 = vmatpush2.msra.mxu0 0.0
    %211 = vmatprep.subr.mxu0 0.0
    %212 = vmatpush2.msra.mxu0 0.0
    %213 = vmatprep.subr.mxu0 0.0
    %214 = vmatpush2.msra.mxu0 0.0
    %215 = vmatprep.subr.mxu0 0.0
    %216 = vmatpush2.msra.mxu0 0.0
    %217 = vmatprep.subr.mxu0 0.0
    %218 = vmatpush2.msra.mxu0 0.0
    %219 = vmatprep.subr.mxu0 0.0
    %220 = vmatpush2.msra.mxu0 0.0
    %221 = vmatprep.subr.mxu0 0.0
    %222 = vmatpush2.msra.mxu0 0.0
    %223 = vmatprep.subr.mxu0 0.0
    %224 = vmatpush2.msra.mxu0 0.0
    %225 = vmatprep.subr.mxu0 0.0
    %226 = vmatpush2.msra.mxu0 0.0
    %227 = vmatprep.subr.mxu0 0.0
    %228 = vmatpush2.msra.mxu0 0.0
    %229 = vmatprep.subr.mxu0 0.0
    %230 = vmatpush2.msra.mxu0 0.0
    %231 = vmatprep.subr.mxu0 0.0
    %232 = vmatpush2.msra.mxu0 0.0
    %233 = vmatprep.subr.mxu0 0.0
    %234 = vmatpush2.msra.mxu0 0.0
    %235 = vmatprep.subr.mxu0 0.0
    %236 = vmatpush2.msra.mxu0 0.0
    %237 = vmatprep.subr.mxu0 0.0
    %238 = vmatpush2.msra.mxu0 0.0
    %239 = vmatprep.subr.mxu0 0.0
    %240 = vmatpush2.msra.mxu0 0.0
    %241 = vmatprep.mubr.f32.mxu0 0.0
    %v242 = vand.u32 %v76, 4294901760
    %243 = vmatmul.mubr.f32.gmra.mxu0 %v242
    %v244 = vpop.f32.mrf.mxu0
    %v245 = vadd.f32 %v154, %v244
    %v246 = vpop.f32.mrf.mxu0
    %247 = vdwg.mxu0
    %248 = vmatprep.subr.mxu0 0.0
    %249 = vmatpush1.msra.mxu0 0.0
    %250 = vmatprep.subr.mxu0 0.0
    %251 = vmatpush1.msra.mxu0 0.0
    %252 = vmatprep.subr.mxu0 0.0
    %253 = vmatpush1.msra.mxu0 0.0
    %254 = vmatprep.subr.mxu0 0.0
    %255 = vmatpush1.msra.mxu0 0.0
    %256 = vmatprep.subr.mxu0 0.0
    %257 = vmatpush1.msra.mxu0 0.0
    %258 = vmatprep.subr.mxu0 0.0
    %259 = vmatpush1.msra.mxu0 0.0
    %260 = vmatprep.subr.mxu0 0.0
    %261 = vmatpush1.msra.mxu0 0.0
    %262 = vmatprep.subr.mxu0 0.0
    %263 = vmatpush1.msra.mxu0 0.0
    %264 = vmatprep.subr.mxu0 0.0
    %265 = vmatpush1.msra.mxu0 0.0
    %266 = vmatprep.subr.mxu0 0.0
    %267 = vmatpush1.msra.mxu0 0.0
    %268 = vmatprep.subr.mxu0 0.0
    %269 = vmatpush1.msra.mxu0 0.0
    %270 = vmatprep.subr.mxu0 0.0
    %271 = vmatpush1.msra.mxu0 0.0
    %272 = vmatprep.subr.mxu0 0.0
    %v273 = vand.u32 %v73, 4294901760
    %v274 = vsub.f32 %v73, %v273
    %275 = vmatpush1.msra.mxu0 %v274
    %276 = vmatprep.subr.mxu0 0.0
    %v277 = vand.u32 %v72, 4294901760
    %v278 = vsub.f32 %v72, %v277
    %279 = vmatpush1.msra.mxu0 %v278
    %280 = vmatprep.subr.mxu0 0.0
    %v281 = vand.u32 %v71, 4294901760
    %v282 = vsub.f32 %v71, %v281
    %283 = vmatpush1.msra.mxu0 %v282
    %284 = vmatprep.subr.mxu0 0.0
    %v285 = vand.u32 %v70, 4294901760
    %v286 = vsub.f32 %v70, %v285
    %287 = vmatpush1.msra.mxu0 %v286
    %288 = vmatprep.subr.mxu0 0.0
    %289 = vmatpush2.msra.mxu0 0.0
    %290 = vmatprep.subr.mxu0 0.0
    %291 = vmatpush2.msra.mxu0 0.0
    %292 = vmatprep.subr.mxu0 0.0
    %293 = vmatpush2.msra.mxu0 0.0
    %294 = vmatprep.subr.mxu0 0.0
    %295 = vmatpush2.msra.mxu0 0.0
    %296 = vmatprep.subr.mxu0 0.0
    %297 = vmatpush2.msra.mxu0 0.0
    %298 = vmatprep.subr.mxu0 0.0
    %299 = vmatpush2.msra.mxu0 0.0
    %300 = vmatprep.subr.mxu0 0.0
    %301 = vmatpush2.msra.mxu0 0.0
    %302 = vmatprep.subr.mxu0 0.0
    %303 = vmatpush2.msra.mxu0 0.0
    %304 = vmatprep.subr.mxu0 0.0
    %305 = vmatpush2.msra.mxu0 0.0
    %306 = vmatprep.subr.mxu0 0.0
    %307 = vmatpush2.msra.mxu0 0.0
    %308 = vmatprep.subr.mxu0 0.0
    %309 = vmatpush2.msra.mxu0 0.0
    %310 = vmatprep.subr.mxu0 0.0
    %311 = vmatpush2.msra.mxu0 0.0
    %312 = vmatprep.subr.mxu0 0.0
    %313 = vmatpush2.msra.mxu0 0.0
    %314 = vmatprep.subr.mxu0 0.0
    %315 = vmatpush2.msra.mxu0 0.0
    %316 = vmatprep.subr.mxu0 0.0
    %317 = vmatpush2.msra.mxu0 0.0
    %318 = vmatprep.subr.mxu0 0.0
    %319 = vmatpush2.msra.mxu0 0.0
    %320 = vmatprep.mubr.f32.mxu0 0.0
    %v321 = vand.u32 %v76, 4294901760
    %v322 = vsub.f32 %v76, %v321
    %323 = vmatmul.mubr.f32.gmra.mxu0 %v322
    %v324 = vpop.f32.mrf.mxu0
    %v325 = vadd.f32 %v245, %v324
    %v326 = vpop.f32.mrf.mxu0
    %327 = vdwg.mxu0
    %328 = vmatprep.subr.mxu0 0.0
    %329 = vmatpush1.msra.mxu0 0.0
    %330 = vmatprep.subr.mxu0 0.0
    %331 = vmatpush1.msra.mxu0 0.0
    %332 = vmatprep.subr.mxu0 0.0
    %333 = vmatpush1.msra.mxu0 0.0
    %334 = vmatprep.subr.mxu0 0.0
    %335 = vmatpush1.msra.mxu0 0.0
    %336 = vmatprep.subr.mxu0 0.0
    %337 = vmatpush1.msra.mxu0 0.0
    %338 = vmatprep.subr.mxu0 0.0
    %339 = vmatpush1.msra.mxu0 0.0
    %340 = vmatprep.subr.mxu0 0.0
    %341 = vmatpush1.msra.mxu0 0.0
    %342 = vmatprep.subr.mxu0 0.0
    %343 = vmatpush1.msra.mxu0 0.0
    %344 = vmatprep.subr.mxu0 0.0
    %345 = vmatpush1.msra.mxu0 0.0
    %346 = vmatprep.subr.mxu0 0.0
    %347 = vmatpush1.msra.mxu0 0.0
    %348 = vmatprep.subr.mxu0 0.0
    %349 = vmatpush1.msra.mxu0 0.0
    %350 = vmatprep.subr.mxu0 0.0
    %351 = vmatpush1.msra.mxu0 0.0
    %352 = vmatprep.subr.mxu0 0.0
    %v353 = vand.u32 %v73, 4294901760
    %354 = vmatpush1.msra.mxu0 %v353
    %355 = vmatprep.subr.mxu0 0.0
    %v356 = vand.u32 %v72, 4294901760
    %357 = vmatpush1.msra.mxu0 %v356
    %358 = vmatprep.subr.mxu0 0.0
    %v359 = vand.u32 %v71, 4294901760
    %360 = vmatpush1.msra.mxu0 %v359
    %361 = vmatprep.subr.mxu0 0.0
    %v362 = vand.u32 %v70, 4294901760
    %363 = vmatpush1.msra.mxu0 %v362
    %364 = vmatprep.subr.mxu0 0.0
    %365 = vmatpush2.msra.mxu0 0.0
    %366 = vmatprep.subr.mxu0 0.0
    %367 = vmatpush2.msra.mxu0 0.0
    %368 = vmatprep.subr.mxu0 0.0
    %369 = vmatpush2.msra.mxu0 0.0
    %370 = vmatprep.subr.mxu0 0.0
    %371 = vmatpush2.msra.mxu0 0.0
    %372 = vmatprep.subr.mxu0 0.0
    %373 = vmatpush2.msra.mxu0 0.0
    %374 = vmatprep.subr.mxu0 0.0
    %375 = vmatpush2.msra.mxu0 0.0
    %376 = vmatprep.subr.mxu0 0.0
    %377 = vmatpush2.msra.mxu0 0.0
    %378 = vmatprep.subr.mxu0 0.0
    %379 = vmatpush2.msra.mxu0 0.0
    %380 = vmatprep.subr.mxu0 0.0
    %381 = vmatpush2.msra.mxu0 0.0
    %382 = vmatprep.subr.mxu0 0.0
    %383 = vmatpush2.msra.mxu0 0.0
    %384 = vmatprep.subr.mxu0 0.0
    %385 = vmatpush2.msra.mxu0 0.0
    %386 = vmatprep.subr.mxu0 0.0
    %387 = vmatpush2.msra.mxu0 0.0
    %388 = vmatprep.subr.mxu0 0.0
    %389 = vmatpush2.msra.mxu0 0.0
    %390 = vmatprep.subr.mxu0 0.0
    %391 = vmatpush2.msra.mxu0 0.0
    %392 = vmatprep.subr.mxu0 0.0
    %393 = vmatpush2.msra.mxu0 0.0
    %394 = vmatprep.subr.mxu0 0.0
    %395 = vmatpush2.msra.mxu0 0.0
    %396 = vmatprep.mubr.f32.mxu0 0.0
    %v397 = vand.u32 %v76, 4294901760
    %v398 = vsub.f32 %v76, %v397
    %v399 = vand.u32 %v398, 4294901760
    %400 = vmatmul.mubr.f32.gmra.mxu0 %v399
    %v401 = vpop.f32.mrf.mxu0
    %v402 = vadd.f32 %v325, %v401
    %v403 = vpop.f32.mrf.mxu0
    %404 = vdwg.mxu0
    %405 = vmatprep.subr.mxu0 0.0
    %406 = vmatpush1.msra.mxu0 0.0
    %407 = vmatprep.subr.mxu0 0.0
    %408 = vmatpush1.msra.mxu0 0.0
    %409 = vmatprep.subr.mxu0 0.0
    %410 = vmatpush1.msra.mxu0 0.0
    %411 = vmatprep.subr.mxu0 0.0
    %412 = vmatpush1.msra.mxu0 0.0
    %413 = vmatprep.subr.mxu0 0.0
    %414 = vmatpush1.msra.mxu0 0.0
    %415 = vmatprep.subr.mxu0 0.0
    %416 = vmatpush1.msra.mxu0 0.0
    %417 = vmatprep.subr.mxu0 0.0
    %418 = vmatpush1.msra.mxu0 0.0
    %419 = vmatprep.subr.mxu0 0.0
    %420 = vmatpush1.msra.mxu0 0.0
    %421 = vmatprep.subr.mxu0 0.0
    %422 = vmatpush1.msra.mxu0 0.0
    %423 = vmatprep.subr.mxu0 0.0
    %424 = vmatpush1.msra.mxu0 0.0
    %425 = vmatprep.subr.mxu0 0.0
    %426 = vmatpush1.msra.mxu0 0.0
    %427 = vmatprep.subr.mxu0 0.0
    %428 = vmatpush1.msra.mxu0 0.0
    %429 = vmatprep.subr.mxu0 0.0
    %v430 = vand.u32 %v73, 4294901760
    %v431 = vsub.f32 %v73, %v430
    %v432 = vand.u32 %v431, 4294901760
    %433 = vmatpush1.msra.mxu0 %v432
    %434 = vmatprep.subr.mxu0 0.0
    %v435 = vand.u32 %v72, 4294901760
    %v436 = vsub.f32 %v72, %v435
    %v437 = vand.u32 %v436, 4294901760
    %438 = vmatpush1.msra.mxu0 %v437
    %439 = vmatprep.subr.mxu0 0.0
    %v440 = vand.u32 %v71, 4294901760
    %v441 = vsub.f32 %v71, %v440
    %v442 = vand.u32 %v441, 4294901760
    %443 = vmatpush1.msra.mxu0 %v442
    %444 = vmatprep.subr.mxu0 0.0
    %v445 = vand.u32 %v70, 4294901760
    %v446 = vsub.f32 %v70, %v445
    %v447 = vand.u32 %v446, 4294901760
    %448 = vmatpush1.msra.mxu0 %v447
    %449 = vmatprep.subr.mxu0 0.0
    %450 = vmatpush2.msra.mxu0 0.0
    %451 = vmatprep.subr.mxu0 0.0
    %452 = vmatpush2.msra.mxu0 0.0
    %453 = vmatprep.subr.mxu0 0.0
    %454 = vmatpush2.msra.mxu0 0.0
    %455 = vmatprep.subr.mxu0 0.0
    %456 = vmatpush2.msra.mxu0 0.0
    %457 = vmatprep.subr.mxu0 0.0
    %458 = vmatpush2.msra.mxu0 0.0
    %459 = vmatprep.subr.mxu0 0.0
    %460 = vmatpush2.msra.mxu0 0.0
    %461 = vmatprep.subr.mxu0 0.0
    %462 = vmatpush2.msra.mxu0 0.0
    %463 = vmatprep.subr.mxu0 0.0
    %464 = vmatpush2.msra.mxu0 0.0
    %465 = vmatprep.subr.mxu0 0.0
    %466 = vmatpush2.msra.mxu0 0.0
    %467 = vmatprep.subr.mxu0 0.0
    %468 = vmatpush2.msra.mxu0 0.0
    %469 = vmatprep.subr.mxu0 0.0
    %470 = vmatpush2.msra.mxu0 0.0
    %471 = vmatprep.subr.mxu0 0.0
    %472 = vmatpush2.msra.mxu0 0.0
    %473 = vmatprep.subr.mxu0 0.0
    %474 = vmatpush2.msra.mxu0 0.0
    %475 = vmatprep.subr.mxu0 0.0
    %476 = vmatpush2.msra.mxu0 0.0
    %477 = vmatprep.subr.mxu0 0.0
    %478 = vmatpush2.msra.mxu0 0.0
    %479 = vmatprep.subr.mxu0 0.0
    %480 = vmatpush2.msra.mxu0 0.0
    %481 = vmatprep.mubr.f32.mxu0 0.0
    %v482 = vand.u32 %v76, 4294901760
    %483 = vmatmul.mubr.f32.gmra.mxu0 %v482
    %v484 = vpop.f32.mrf.mxu0
    %v485 = vadd.f32 %v402, %v484
    %v486 = vpop.f32.mrf.mxu0
    %487 = vdwg.mxu0
    %488 = vmatprep.subr.mxu0 0.0
    %489 = vmatpush1.msra.mxu0 0.0
    %490 = vmatprep.subr.mxu0 0.0
    %491 = vmatpush1.msra.mxu0 0.0
    %492 = vmatprep.subr.mxu0 0.0
    %493 = vmatpush1.msra.mxu0 0.0
    %494 = vmatprep.subr.mxu0 0.0
    %495 = vmatpush1.msra.mxu0 0.0
    %496 = vmatprep.subr.mxu0 0.0
    %497 = vmatpush1.msra.mxu0 0.0
    %498 = vmatprep.subr.mxu0 0.0
    %499 = vmatpush1.msra.mxu0 0.0
    %500 = vmatprep.subr.mxu0 0.0
    %501 = vmatpush1.msra.mxu0 0.0
    %502 = vmatprep.subr.mxu0 0.0
    %503 = vmatpush1.msra.mxu0 0.0
    %504 = vmatprep.subr.mxu0 0.0
    %505 = vmatpush1.msra.mxu0 0.0
    %506 = vmatprep.subr.mxu0 0.0
    %507 = vmatpush1.msra.mxu0 0.0
    %508 = vmatprep.subr.mxu0 0.0
    %509 = vmatpush1.msra.mxu0 0.0
    %510 = vmatprep.subr.mxu0 0.0
    %511 = vmatpush1.msra.mxu0 0.0
    %512 = vmatprep.subr.mxu0 0.0
    %v513 = vand.u32 %v73, 4294901760
    %514 = vmatpush1.msra.mxu0 %v513
    %515 = vmatprep.subr.mxu0 0.0
    %v516 = vand.u32 %v72, 4294901760
    %517 = vmatpush1.msra.mxu0 %v516
    %518 = vmatprep.subr.mxu0 0.0
    %v519 = vand.u32 %v71, 4294901760
    %520 = vmatpush1.msra.mxu0 %v519
    %521 = vmatprep.subr.mxu0 0.0
    %v522 = vand.u32 %v70, 4294901760
    %523 = vmatpush1.msra.mxu0 %v522
    %524 = vmatprep.subr.mxu0 0.0
    %525 = vmatpush2.msra.mxu0 0.0
    %526 = vmatprep.subr.mxu0 0.0
    %527 = vmatpush2.msra.mxu0 0.0
    %528 = vmatprep.subr.mxu0 0.0
    %529 = vmatpush2.msra.mxu0 0.0
    %530 = vmatprep.subr.mxu0 0.0
    %531 = vmatpush2.msra.mxu0 0.0
    %532 = vmatprep.subr.mxu0 0.0
    %533 = vmatpush2.msra.mxu0 0.0
    %534 = vmatprep.subr.mxu0 0.0
    %535 = vmatpush2.msra.mxu0 0.0
    %536 = vmatprep.subr.mxu0 0.0
    %537 = vmatpush2.msra.mxu0 0.0
    %538 = vmatprep.subr.mxu0 0.0
    %539 = vmatpush2.msra.mxu0 0.0
    %540 = vmatprep.subr.mxu0 0.0
    %541 = vmatpush2.msra.mxu0 0.0
    %542 = vmatprep.subr.mxu0 0.0
    %543 = vmatpush2.msra.mxu0 0.0
    %544 = vmatprep.subr.mxu0 0.0
    %545 = vmatpush2.msra.mxu0 0.0
    %546 = vmatprep.subr.mxu0 0.0
    %547 = vmatpush2.msra.mxu0 0.0
    %548 = vmatprep.subr.mxu0 0.0
    %549 = vmatpush2.msra.mxu0 0.0
    %550 = vmatprep.subr.mxu0 0.0
    %551 = vmatpush2.msra.mxu0 0.0
    %552 = vmatprep.subr.mxu0 0.0
    %553 = vmatpush2.msra.mxu0 0.0
    %554 = vmatprep.subr.mxu0 0.0
    %555 = vmatpush2.msra.mxu0 0.0
    %556 = vmatprep.mubr.f32.mxu0 0.0
    %v557 = vand.u32 %v76, 4294901760
    %558 = vmatmul.mubr.f32.gmra.mxu0 %v557
    %v559 = vpop.f32.mrf.mxu0
    %v560 = vadd.f32 %v485, %v559
    %v561 = vpop.f32.mrf.mxu0
    %562 = vdwg.mxu0
    %v563 = vmul.f32 %v560, 0.088388346
    %v564 = vld [vmem:[#allocation5] sm:$0xff]
    %v565 = vld [vmem:[#allocation8] sm:$0xff]
    %v566 = vld [vmem:[#allocation8 + $0x8] sm:$0xff]
    %vm567 = vcmask 130048
    %v569 = vsel %vm567, %v564, 0
    %571 = vmatprep.subr.mxu0 0.0
    %572 = vmatpush1.msra.mxu0 0.0
    %573 = vmatprep.subr.mxu0 0.0
    %574 = vmatpush1.msra.mxu0 0.0
    %575 = vmatprep.subr.mxu0 0.0
    %576 = vmatpush1.msra.mxu0 0.0
    %577 = vmatprep.subr.mxu0 0.0
    %578 = vmatpush1.msra.mxu0 0.0
    %579 = vmatprep.subr.mxu0 0.0
    %580 = vmatpush1.msra.mxu0 0.0
    %581 = vmatprep.subr.mxu0 0.0
    %582 = vmatpush1.msra.mxu0 0.0
    %583 = vmatprep.subr.mxu0 0.0
    %584 = vmatpush1.msra.mxu0 0.0
    %585 = vmatprep.subr.mxu0 0.0
    %586 = vmatpush1.msra.mxu0 0.0
    %587 = vmatprep.subr.mxu0 0.0
    %588 = vmatpush1.msra.mxu0 0.0
    %589 = vmatprep.subr.mxu0 0.0
    %590 = vmatpush1.msra.mxu0 0.0
    %591 = vmatprep.subr.mxu0 0.0
    %592 = vmatpush1.msra.mxu0 0.0
    %593 = vmatprep.subr.mxu0 0.0
    %594 = vmatpush1.msra.mxu0 0.0
    %595 = vmatprep.subr.mxu0 0.0
    %596 = vmatpush1.msra.mxu0 0.0
    %597 = vmatprep.subr.mxu0 0.0
    %598 = vmatpush1.msra.mxu0 0.0
    %599 = vmatprep.subr.mxu0 0.0
    %v600 = vand.u32 %v566, 4294901760
    %601 = vmatpush1.msra.mxu0 %v600
    %602 = vmatprep.subr.mxu0 0.0
    %v603 = vand.u32 %v565, 4294901760
    %604 = vmatpush1.msra.mxu0 %v603
    %605 = vmatprep.subr.mxu0 0.0
    %606 = vmatpush2.msra.mxu0 0.0
    %607 = vmatprep.subr.mxu0 0.0
    %608 = vmatpush2.msra.mxu0 0.0
    %609 = vmatprep.subr.mxu0 0.0
    %610 = vmatpush2.msra.mxu0 0.0
    %611 = vmatprep.subr.mxu0 0.0
    %612 = vmatpush2.msra.mxu0 0.0
    %613 = vmatprep.subr.mxu0 0.0
    %614 = vmatpush2.msra.mxu0 0.0
    %615 = vmatprep.subr.mxu0 0.0
    %616 = vmatpush2.msra.mxu0 0.0
    %617 = vmatprep.subr.mxu0 0.0
    %618 = vmatpush2.msra.mxu0 0.0
    %619 = vmatprep.subr.mxu0 0.0
    %620 = vmatpush2.msra.mxu0 0.0
    %621 = vmatprep.subr.mxu0 0.0
    %622 = vmatpush2.msra.mxu0 0.0
    %623 = vmatprep.subr.mxu0 0.0
    %624 = vmatpush2.msra.mxu0 0.0
    %625 = vmatprep.subr.mxu0 0.0
    %626 = vmatpush2.msra.mxu0 0.0
    %627 = vmatprep.subr.mxu0 0.0
    %628 = vmatpush2.msra.mxu0 0.0
    %629 = vmatprep.subr.mxu0 0.0
    %630 = vmatpush2.msra.mxu0 0.0
    %631 = vmatprep.subr.mxu0 0.0
    %632 = vmatpush2.msra.mxu0 0.0
    %633 = vmatprep.subr.mxu0 0.0
    %634 = vmatpush2.msra.mxu0 0.0
    %635 = vmatprep.subr.mxu0 0.0
    %636 = vmatpush2.msra.mxu0 0.0
    %637 = vmatprep.mubr.f32.mxu0 0.0
    %v638 = vand.u32 %v569, 4294901760
    %v639 = vsub.f32 %v569, %v638
    %v640 = vand.u32 %v639, 4294901760
    %v641 = vsub.f32 %v639, %v640
    %v642 = vand.u32 %v641, 4294901760
    %643 = vmatmul.mubr.f32.gmra.mxu0 %v642
    %v644 = vpop.f32.mrf.mxu0
    %v645 = vadd.f32 0.0, %v644
    %v646 = vpop.f32.mrf.mxu0
    %647 = vdwg.mxu0
    %648 = vmatprep.subr.mxu0 0.0
    %649 = vmatpush1.msra.mxu0 0.0
    %650 = vmatprep.subr.mxu0 0.0
    %651 = vmatpush1.msra.mxu0 0.0
    %652 = vmatprep.subr.mxu0 0.0
    %653 = vmatpush1.msra.mxu0 0.0
    %654 = vmatprep.subr.mxu0 0.0
    %655 = vmatpush1.msra.mxu0 0.0
    %656 = vmatprep.subr.mxu0 0.0
    %657 = vmatpush1.msra.mxu0 0.0
    %658 = vmatprep.subr.mxu0 0.0
    %659 = vmatpush1.msra.mxu0 0.0
    %660 = vmatprep.subr.mxu0 0.0
    %661 = vmatpush1.msra.mxu0 0.0
    %662 = vmatprep.subr.mxu0 0.0
    %663 = vmatpush1.msra.mxu0 0.0
    %664 = vmatprep.subr.mxu0 0.0
    %665 = vmatpush1.msra.mxu0 0.0
    %666 = vmatprep.subr.mxu0 0.0
    %667 = vmatpush1.msra.mxu0 0.0
    %668 = vmatprep.subr.mxu0 0.0
    %669 = vmatpush1.msra.mxu0 0.0
    %670 = vmatprep.subr.mxu0 0.0
    %671 = vmatpush1.msra.mxu0 0.0
    %672 = vmatprep.subr.mxu0 0.0
    %673 = vmatpush1.msra.mxu0 0.0
    %674 = vmatprep.subr.mxu0 0.0
    %675 = vmatpush1.msra.mxu0 0.0
    %676 = vmatprep.subr.mxu0 0.0
    %v677 = vand.u32 %v566, 4294901760
    %v678 = vsub.f32 %v566, %v677
    %v679 = vand.u32 %v678, 4294901760
    %v680 = vsub.f32 %v678, %v679
    %v681 = vand.u32 %v680, 4294901760
    %682 = vmatpush1.msra.mxu0 %v681
    %683 = vmatprep.subr.mxu0 0.0
    %v684 = vand.u32 %v565, 4294901760
    %v685 = vsub.f32 %v565, %v684
    %v686 = vand.u32 %v685, 4294901760
    %v687 = vsub.f32 %v685, %v686
    %v688 = vand.u32 %v687, 4294901760
    %689 = vmatpush1.msra.mxu0 %v688
    %690 = vmatprep.subr.mxu0 0.0
    %691 = vmatpush2.msra.mxu0 0.0
    %692 = vmatprep.subr.mxu0 0.0
    %693 = vmatpush2.msra.mxu0 0.0
    %694 = vmatprep.subr.mxu0 0.0
    %695 = vmatpush2.msra.mxu0 0.0
    %696 = vmatprep.subr.mxu0 0.0
    %697 = vmatpush2.msra.mxu0 0.0
    %698 = vmatprep.subr.mxu0 0.0
    %699 = vmatpush2.msra.mxu0 0.0
    %700 = vmatprep.subr.mxu0 0.0
    %701 = vmatpush2.msra.mxu0 0.0
    %702 = vmatprep.subr.mxu0 0.0
    %703 = vmatpush2.msra.mxu0 0.0
    %704 = vmatprep.subr.mxu0 0.0
    %705 = vmatpush2.msra.mxu0 0.0
    %706 = vmatprep.subr.mxu0 0.0
    %707 = vmatpush2.msra.mxu0 0.0
    %708 = vmatprep.subr.mxu0 0.0
    %709 = vmatpush2.msra.mxu0 0.0
    %710 = vmatprep.subr.mxu0 0.0
    %711 = vmatpush2.msra.mxu0 0.0
    %712 = vmatprep.subr.mxu0 0.0
    %713 = vmatpush2.msra.mxu0 0.0
    %714 = vmatprep.subr.mxu0 0.0
    %715 = vmatpush2.msra.mxu0 0.0
    %716 = vmatprep.subr.mxu0 0.0
    %717 = vmatpush2.msra.mxu0 0.0
    %718 = vmatprep.subr.mxu0 0.0
    %719 = vmatpush2.msra.mxu0 0.0
    %720 = vmatprep.subr.mxu0 0.0
    %721 = vmatpush2.msra.mxu0 0.0
    %722 = vmatprep.mubr.f32.mxu0 0.0
    %v723 = vand.u32 %v569, 4294901760
    %724 = vmatmul.mubr.f32.gmra.mxu0 %v723
    %v725 = vpop.f32.mrf.mxu0
    %v726 = vadd.f32 %v645, %v725
    %v727 = vpop.f32.mrf.mxu0
    %728 = vdwg.mxu0
    %729 = vmatprep.subr.mxu0 0.0
    %730 = vmatpush1.msra.mxu0 0.0
    %731 = vmatprep.subr.mxu0 0.0
    %732 = vmatpush1.msra.mxu0 0.0
    %733 = vmatprep.subr.mxu0 0.0
    %734 = vmatpush1.msra.mxu0 0.0
    %735 = vmatprep.subr.mxu0 0.0
    %736 = vmatpush1.msra.mxu0 0.0
    %737 = vmatprep.subr.mxu0 0.0
    %738 = vmatpush1.msra.mxu0 0.0
    %739 = vmatprep.subr.mxu0 0.0
    %740 = vmatpush1.msra.mxu0 0.0
    %741 = vmatprep.subr.mxu0 0.0
    %742 = vmatpush1.msra.mxu0 0.0
    %743 = vmatprep.subr.mxu0 0.0
    %744 = vmatpush1.msra.mxu0 0.0
    %745 = vmatprep.subr.mxu0 0.0
    %746 = vmatpush1.msra.mxu0 0.0
    %747 = vmatprep.subr.mxu0 0.0
    %748 = vmatpush1.msra.mxu0 0.0
    %749 = vmatprep.subr.mxu0 0.0
    %750 = vmatpush1.msra.mxu0 0.0
    %751 = vmatprep.subr.mxu0 0.0
    %752 = vmatpush1.msra.mxu0 0.0
    %753 = vmatprep.subr.mxu0 0.0
    %754 = vmatpush1.msra.mxu0 0.0
    %755 = vmatprep.subr.mxu0 0.0
    %756 = vmatpush1.msra.mxu0 0.0
    %757 = vmatprep.subr.mxu0 0.0
    %v758 = vand.u32 %v566, 4294901760
    %v759 = vsub.f32 %v566, %v758
    %760 = vmatpush1.msra.mxu0 %v759
    %761 = vmatprep.subr.mxu0 0.0
    %v762 = vand.u32 %v565, 4294901760
    %v763 = vsub.f32 %v565, %v762
    %764 = vmatpush1.msra.mxu0 %v763
    %765 = vmatprep.subr.mxu0 0.0
    %766 = vmatpush2.msra.mxu0 0.0
    %767 = vmatprep.subr.mxu0 0.0
    %768 = vmatpush2.msra.mxu0 0.0
    %769 = vmatprep.subr.mxu0 0.0
    %770 = vmatpush2.msra.mxu0 0.0
    %771 = vmatprep.subr.mxu0 0.0
    %772 = vmatpush2.msra.mxu0 0.0
    %773 = vmatprep.subr.mxu0 0.0
    %774 = vmatpush2.msra.mxu0 0.0
    %775 = vmatprep.subr.mxu0 0.0
    %776 = vmatpush2.msra.mxu0 0.0
    %777 = vmatprep.subr.mxu0 0.0
    %778 = vmatpush2.msra.mxu0 0.0
    %779 = vmatprep.subr.mxu0 0.0
    %780 = vmatpush2.msra.mxu0 0.0
    %781 = vmatprep.subr.mxu0 0.0
    %782 = vmatpush2.msra.mxu0 0.0
    %783 = vmatprep.subr.mxu0 0.0
    %784 = vmatpush2.msra.mxu0 0.0
    %785 = vmatprep.subr.mxu0 0.0
    %786 = vmatpush2.msra.mxu0 0.0
    %787 = vmatprep.subr.mxu0 0.0
    %788 = vmatpush2.msra.mxu0 0.0
    %789 = vmatprep.subr.mxu0 0.0
    %790 = vmatpush2.msra.mxu0 0.0
    %791 = vmatprep.subr.mxu0 0.0
    %792 = vmatpush2.msra.mxu0 0.0
    %793 = vmatprep.subr.mxu0 0.0
    %794 = vmatpush2.msra.mxu0 0.0
    %795 = vmatprep.subr.mxu0 0.0
    %796 = vmatpush2.msra.mxu0 0.0
    %797 = vmatprep.mubr.f32.mxu0 0.0
    %v798 = vand.u32 %v569, 4294901760
    %v799 = vsub.f32 %v569, %v798
    %800 = vmatmul.mubr.f32.gmra.mxu0 %v799
    %v801 = vpop.f32.mrf.mxu0
    %v802 = vadd.f32 %v726, %v801
    %v803 = vpop.f32.mrf.mxu0
    %804 = vdwg.mxu0
    %805 = vmatprep.subr.mxu0 0.0
    %806 = vmatpush1.msra.mxu0 0.0
    %807 = vmatprep.subr.mxu0 0.0
    %808 = vmatpush1.msra.mxu0 0.0
    %809 = vmatprep.subr.mxu0 0.0
    %810 = vmatpush1.msra.mxu0 0.0
    %811 = vmatprep.subr.mxu0 0.0
    %812 = vmatpush1.msra.mxu0 0.0
    %813 = vmatprep.subr.mxu0 0.0
    %814 = vmatpush1.msra.mxu0 0.0
    %815 = vmatprep.subr.mxu0 0.0
    %816 = vmatpush1.msra.mxu0 0.0
    %817 = vmatprep.subr.mxu0 0.0
    %818 = vmatpush1.msra.mxu0 0.0
    %819 = vmatprep.subr.mxu0 0.0
    %820 = vmatpush1.msra.mxu0 0.0
    %821 = vmatprep.subr.mxu0 0.0
    %822 = vmatpush1.msra.mxu0 0.0
    %823 = vmatprep.subr.mxu0 0.0
    %824 = vmatpush1.msra.mxu0 0.0
    %825 = vmatprep.subr.mxu0 0.0
    %826 = vmatpush1.msra.mxu0 0.0
    %827 = vmatprep.subr.mxu0 0.0
    %828 = vmatpush1.msra.mxu0 0.0
    %829 = vmatprep.subr.mxu0 0.0
    %830 = vmatpush1.msra.mxu0 0.0
    %831 = vmatprep.subr.mxu0 0.0
    %832 = vmatpush1.msra.mxu0 0.0
    %833 = vmatprep.subr.mxu0 0.0
    %v834 = vand.u32 %v566, 4294901760
    %835 = vmatpush1.msra.mxu0 %v834
    %836 = vmatprep.subr.mxu0 0.0
    %v837 = vand.u32 %v565, 4294901760
    %838 = vmatpush1.msra.mxu0 %v837
    %839 = vmatprep.subr.mxu0 0.0
    %840 = vmatpush2.msra.mxu0 0.0
    %841 = vmatprep.subr.mxu0 0.0
    %842 = vmatpush2.msra.mxu0 0.0
    %843 = vmatprep.subr.mxu0 0.0
    %844 = vmatpush2.msra.mxu0 0.0
    %845 = vmatprep.subr.mxu0 0.0
    %846 = vmatpush2.msra.mxu0 0.0
    %847 = vmatprep.subr.mxu0 0.0
    %848 = vmatpush2.msra.mxu0 0.0
    %849 = vmatprep.subr.mxu0 0.0
    %850 = vmatpush2.msra.mxu0 0.0
    %851 = vmatprep.subr.mxu0 0.0
    %852 = vmatpush2.msra.mxu0 0.0
    %853 = vmatprep.subr.mxu0 0.0
    %854 = vmatpush2.msra.mxu0 0.0
    %855 = vmatprep.subr.mxu0 0.0
    %856 = vmatpush2.msra.mxu0 0.0
    %857 = vmatprep.subr.mxu0 0.0
    %858 = vmatpush2.msra.mxu0 0.0
    %859 = vmatprep.subr.mxu0 0.0
    %860 = vmatpush2.msra.mxu0 0.0
    %861 = vmatprep.subr.mxu0 0.0
    %862 = vmatpush2.msra.mxu0 0.0
    %863 = vmatprep.subr.mxu0 0.0
    %864 = vmatpush2.msra.mxu0 0.0
    %865 = vmatprep.subr.mxu0 0.0
    %866 = vmatpush2.msra.mxu0 0.0
    %867 = vmatprep.subr.mxu0 0.0
    %868 = vmatpush2.msra.mxu0 0.0
    %869 = vmatprep.subr.mxu0 0.0
    %870 = vmatpush2.msra.mxu0 0.0
    %871 = vmatprep.mubr.f32.mxu0 0.0
    %v872 = vand.u32 %v569, 4294901760
    %v873 = vsub.f32 %v569, %v872
    %v874 = vand.u32 %v873, 4294901760
    %875 = vmatmul.mubr.f32.gmra.mxu0 %v874
    %v876 = vpop.f32.mrf.mxu0
    %v877 = vadd.f32 %v802, %v876
    %v878 = vpop.f32.mrf.mxu0
    %879 = vdwg.mxu0
    %880 = vmatprep.subr.mxu0 0.0
    %881 = vmatpush1.msra.mxu0 0.0
    %882 = vmatprep.subr.mxu0 0.0
    %883 = vmatpush1.msra.mxu0 0.0
    %884 = vmatprep.subr.mxu0 0.0
    %885 = vmatpush1.msra.mxu0 0.0
    %886 = vmatprep.subr.mxu0 0.0
    %887 = vmatpush1.msra.mxu0 0.0
    %888 = vmatprep.subr.mxu0 0.0
    %889 = vmatpush1.msra.mxu0 0.0
    %890 = vmatprep.subr.mxu0 0.0
    %891 = vmatpush1.msra.mxu0 0.0
    %892 = vmatprep.subr.mxu0 0.0
    %893 = vmatpush1.msra.mxu0 0.0
    %894 = vmatprep.subr.mxu0 0.0
    %895 = vmatpush1.msra.mxu0 0.0
    %896 = vmatprep.subr.mxu0 0.0
    %897 = vmatpush1.msra.mxu0 0.0
    %898 = vmatprep.subr.mxu0 0.0
    %899 = vmatpush1.msra.mxu0 0.0
    %900 = vmatprep.subr.mxu0 0.0
    %901 = vmatpush1.msra.mxu0 0.0
    %902 = vmatprep.subr.mxu0 0.0
    %903 = vmatpush1.msra.mxu0 0.0
    %904 = vmatprep.subr.mxu0 0.0
    %905 = vmatpush1.msra.mxu0 0.0
    %906 = vmatprep.subr.mxu0 0.0
    %907 = vmatpush1.msra.mxu0 0.0
    %908 = vmatprep.subr.mxu0 0.0
    %v909 = vand.u32 %v566, 4294901760
    %v910 = vsub.f32 %v566, %v909
    %v911 = vand.u32 %v910, 4294901760
    %912 = vmatpush1.msra.mxu0 %v911
    %913 = vmatprep.subr.mxu0 0.0
    %v914 = vand.u32 %v565, 4294901760
    %v915 = vsub.f32 %v565, %v914
    %v916 = vand.u32 %v915, 4294901760
    %917 = vmatpush1.msra.mxu0 %v916
    %918 = vmatprep.subr.mxu0 0.0
    %919 = vmatpush2.msra.mxu0 0.0
    %920 = vmatprep.subr.mxu0 0.0
    %921 = vmatpush2.msra.mxu0 0.0
    %922 = vmatprep.subr.mxu0 0.0
    %923 = vmatpush2.msra.mxu0 0.0
    %924 = vmatprep.subr.mxu0 0.0
    %925 = vmatpush2.msra.mxu0 0.0
    %926 = vmatprep.subr.mxu0 0.0
    %927 = vmatpush2.msra.mxu0 0.0
    %928 = vmatprep.subr.mxu0 0.0
    %929 = vmatpush2.msra.mxu0 0.0
    %930 = vmatprep.subr.mxu0 0.0
    %931 = vmatpush2.msra.mxu0 0.0
    %932 = vmatprep.subr.mxu0 0.0
    %933 = vmatpush2.msra.mxu0 0.0
    %934 = vmatprep.subr.mxu0 0.0
    %935 = vmatpush2.msra.mxu0 0.0
    %936 = vmatprep.subr.mxu0 0.0
    %937 = vmatpush2.msra.mxu0 0.0
    %938 = vmatprep.subr.mxu0 0.0
    %939 = vmatpush2.msra.mxu0 0.0
    %940 = vmatprep.subr.mxu0 0.0
    %941 = vmatpush2.msra.mxu0 0.0
    %942 = vmatprep.subr.mxu0 0.0
    %943 = vmatpush2.msra.mxu0 0.0
    %944 = vmatprep.subr.mxu0 0.0
    %945 = vmatpush2.msra.mxu0 0.0
    %946 = vmatprep.subr.mxu0 0.0
    %947 = vmatpush2.msra.mxu0 0.0
    %948 = vmatprep.subr.mxu0 0.0
    %949 = vmatpush2.msra.mxu0 0.0
    %950 = vmatprep.mubr.f32.mxu0 0.0
    %v951 = vand.u32 %v569, 4294901760
    %952 = vmatmul.mubr.f32.gmra.mxu0 %v951
    %v953 = vpop.f32.mrf.mxu0
    %v954 = vadd.f32 %v877, %v953
    %v955 = vpop.f32.mrf.mxu0
    %956 = vdwg.mxu0
    %957 = vmatprep.subr.mxu0 0.0
    %958 = vmatpush1.msra.mxu0 0.0
    %959 = vmatprep.subr.mxu0 0.0
    %960 = vmatpush1.msra.mxu0 0.0
    %961 = vmatprep.subr.mxu0 0.0
    %962 = vmatpush1.msra.mxu0 0.0
    %963 = vmatprep.subr.mxu0 0.0
    %964 = vmatpush1.msra.mxu0 0.0
    %965 = vmatprep.subr.mxu0 0.0
    %966 = vmatpush1.msra.mxu0 0.0
    %967 = vmatprep.subr.mxu0 0.0
    %968 = vmatpush1.msra.mxu0 0.0
    %969 = vmatprep.subr.mxu0 0.0
    %970 = vmatpush1.msra.mxu0 0.0
    %971 = vmatprep.subr.mxu0 0.0
    %972 = vmatpush1.msra.mxu0 0.0
    %973 = vmatprep.subr.mxu0 0.0
    %974 = vmatpush1.msra.mxu0 0.0
    %975 = vmatprep.subr.mxu0 0.0
    %976 = vmatpush1.msra.mxu0 0.0
    %977 = vmatprep.subr.mxu0 0.0
    %978 = vmatpush1.msra.mxu0 0.0
    %979 = vmatprep.subr.mxu0 0.0
    %980 = vmatpush1.msra.mxu0 0.0
    %981 = vmatprep.subr.mxu0 0.0
    %982 = vmatpush1.msra.mxu0 0.0
    %983 = vmatprep.subr.mxu0 0.0
    %984 = vmatpush1.msra.mxu0 0.0
    %985 = vmatprep.subr.mxu0 0.0
    %v986 = vand.u32 %v566, 4294901760
    %987 = vmatpush1.msra.mxu0 %v986
    %988 = vmatprep.subr.mxu0 0.0
    %v989 = vand.u32 %v565, 4294901760
    %990 = vmatpush1.msra.mxu0 %v989
    %991 = vmatprep.subr.mxu0 0.0
    %992 = vmatpush2.msra.mxu0 0.0
    %993 = vmatprep.subr.mxu0 0.0
    %994 = vmatpush2.msra.mxu0 0.0
    %995 = vmatprep.subr.mxu0 0.0
    %996 = vmatpush2.msra.mxu0 0.0
    %997 = vmatprep.subr.mxu0 0.0
    %998 = vmatpush2.msra.mxu0 0.0
    %999 = vmatprep.subr.mxu0 0.0
    %1000 = vmatpush2.msra.mxu0 0.0
    %1001 = vmatprep.subr.mxu0 0.0
    %1002 = vmatpush2.msra.mxu0 0.0
    %1003 = vmatprep.subr.mxu0 0.0
    %1004 = vmatpush2.msra.mxu0 0.0
    %1005 = vmatprep.subr.mxu0 0.0
    %1006 = vmatpush2.msra.mxu0 0.0
    %1007 = vmatprep.subr.mxu0 0.0
    %1008 = vmatpush2.msra.mxu0 0.0
    %1009 = vmatprep.subr.mxu0 0.0
    %1010 = vmatpush2.msra.mxu0 0.0
    %1011 = vmatprep.subr.mxu0 0.0
    %1012 = vmatpush2.msra.mxu0 0.0
    %1013 = vmatprep.subr.mxu0 0.0
    %1014 = vmatpush2.msra.mxu0 0.0
    %1015 = vmatprep.subr.mxu0 0.0
    %1016 = vmatpush2.msra.mxu0 0.0
    %1017 = vmatprep.subr.mxu0 0.0
    %1018 = vmatpush2.msra.mxu0 0.0
    %1019 = vmatprep.subr.mxu0 0.0
    %1020 = vmatpush2.msra.mxu0 0.0
    %1021 = vmatprep.subr.mxu0 0.0
    %1022 = vmatpush2.msra.mxu0 0.0
    %1023 = vmatprep.mubr.f32.mxu0 0.0
    %v1024 = vand.u32 %v569, 4294901760
    %1025 = vmatmul.mubr.f32.gmra.mxu0 %v1024
    %v1026 = vpop.f32.mrf.mxu0
    %v1027 = vadd.f32 %v954, %v1026
    %v1028 = vpop.f32.mrf.mxu0
    %1029 = vdwg.mxu0
    %v1030 = vmul.f32 %v563, %v1027
    %1031 = vst [vmem:[#allocation10] sm:$0xff] %v1030
    // Predicated region
    $region34: #{tpu_custom_call.1} parent=1 // pred_check
      _
    $region35: #{tpu_custom_call.1} parent=1 // pred_check_branch
      %1033 = sbr.rel (0) target = $region37
    $region36: #{tpu_custom_call.1} parent=1 // pred_region
      %s1035 = ssub.s32 128, 128
      %1036 = vsyncadd [#allocation4], %s1035
      %s1038 = sshll.u32 [#allocation10], 4
      %s1039 = int_to_ptr.vmem [resolvable:$true] %s1038
      %1041 = dma.vmem_to_hbm [thread:$0]  %s1039, 128, %s4, [#allocation4]
    $region37: #{tpu_custom_call.1} parent=1 // pred_fallthru
      _
    // Predicated region
    $region38: #{tpu_custom_call.1} parent=1 // pred_check
      _
    $region39: #{tpu_custom_call.1} parent=1 // pred_check_branch
      %1043 = sbr.rel (0) target = $region41
    $region40: #{tpu_custom_call.1} parent=1 // pred_region
      %1044 = dma.done [#allocation4], 128
    $region41: #{tpu_custom_call.1} parent=1 // pred_fallthru
      _
    %1045 = vsyncpa [#allocation3], 1
    %1046 = vsyncpa [#allocation6], 1
    %1047 = vsyncpa [#allocation9], 1
    %1048 = vsyncpa [#allocation4], 1

</llo_original>
